<compile_context>
chip_gen: v5e
topology: v5e:2x2
jax: 0.10.0
libtpu: 0.0.40
codegen_flags: <defaults>
</compile_context>

<pallas_src>
import functools

import jax
import jax.numpy as jnp
from jax import lax
from jax.experimental import pallas as pl
from jax.experimental.pallas import tpu as pltpu


def _lstm_kernel(x_ref, wih_ref, whh_ref, b_ref, h0_ref, c0_ref,
                 wlin_ref, blin_ref,
                 out_ref, hn_ref, cn_ref,
                 gx_sc, h_sc, c_sc, *, hidden_size, seq_len):
    """Full LSTM recurrence + linear head + log-softmax in one kernel."""
    H = hidden_size
    T = seq_len

    # --- hoisted input projection for all timesteps (bias folded in) -------
    # (T, I) @ (I, 4H) + (1, 4H)  ->  (T, 4H)   (runs with T sublanes filled)
    gx_sc[...] = (jnp.dot(x_ref[...], wih_ref[...],
                          preferred_element_type=jnp.float32)
                  + b_ref[...])

    # --- initialize recurrent state ----------------------------------------
    h_sc[...] = h0_ref[...]
    c_sc[...] = c0_ref[...]

    # --- serial recurrence (fully unrolled, T is static & tiny) ------------
    def step(t, carry):
        gates = (jnp.dot(h_sc[...], whh_ref[...],
                         preferred_element_type=jnp.float32)
                 + gx_sc[pl.ds(t, 1), :])                    # (1, 4H)
        s = jax.nn.sigmoid(gates)                            # full-width EUP
        tg = jnp.tanh(gates)                                 # full-width EUP
        i_g = s[:, 0 * H:1 * H]
        f_g = s[:, 1 * H:2 * H]
        g_g = tg[:, 2 * H:3 * H]
        o_g = s[:, 3 * H:4 * H]
        c_new = f_g * c_sc[...] + i_g * g_g
        h_new = o_g * jnp.tanh(c_new)
        c_sc[...] = c_new
        h_sc[...] = h_new
        return carry

    lax.fori_loop(0, T, step, 0, unroll=True)

    # --- linear head + numerically-stable log-softmax ----------------------
    logits = (jnp.dot(h_sc[...], wlin_ref[...],
                      preferred_element_type=jnp.float32)
              + blin_ref[...])                               # (1, O)
    m = jnp.max(logits, axis=-1, keepdims=True)
    z = logits - m
    lse = jnp.log(jnp.sum(jnp.exp(z), axis=-1, keepdims=True))
    out_ref[...] = z - lse
    hn_ref[...] = h_sc[...]
    cn_ref[...] = c_sc[...]


def my_lstm_forward(x, params, hidden, c):
    """x: (seq_len, input_size); hidden, c: (num_layers=1, 1, hidden_size).

    Returns (logprobs (1, output_size), hn (1,1,H), cn (1,1,H)) matching the
    PyTorch module's forward outputs (batch dim of 1).
    """
    seq_len, _ = x.shape
    H = params["w_hh_t"].shape[0]
    O = params["w_lin_t"].shape[1]

    h0 = hidden.reshape(1, H).astype(jnp.float32)
    c0 = c.reshape(1, H).astype(jnp.float32)

    vmem_spec = pl.BlockSpec(memory_space=pltpu.MemorySpace.VMEM)

    out_shapes = (
        jax.ShapeDtypeStruct((1, O), jnp.float32),   # log-softmax result
        jax.ShapeDtypeStruct((1, H), jnp.float32),   # hn
        jax.ShapeDtypeStruct((1, H), jnp.float32),   # cn
    )

    kernel = functools.partial(_lstm_kernel, hidden_size=H, seq_len=seq_len)

    logp, hn, cn = pl.pallas_call(
        kernel,
        out_shape=out_shapes,
        in_specs=[vmem_spec] * 8,
        out_specs=(vmem_spec, vmem_spec, vmem_spec),
        scratch_shapes=[
            pltpu.VMEM((seq_len, 4 * H), jnp.float32),   # hoisted input gates
            pltpu.VMEM((1, H), jnp.float32),             # h state
            pltpu.VMEM((1, H), jnp.float32),             # c state
        ],
    )(
        x.astype(jnp.float32),
        params["w_ih_t"], params["w_hh_t"], params["b_gates"],
        h0, c0,
        params["w_lin_t"], params["b_lin"],
    )

    return logp, hn.reshape(1, 1, H), cn.reshape(1, 1, H)


def init_params(key, input_size, hidden_size, output_size):
    """Deterministic synthetic params mirroring nn.LSTM / nn.Linear shapes."""
    k = jax.random.split(key, 6)
    bound = 1.0 / jnp.sqrt(hidden_size)
    # nn.LSTM: weight_ih_l0 (4H, I), weight_hh_l0 (4H, H), biases (4H,)
    w_ih = jax.random.uniform(k[0], (4 * hidden_size, input_size), jnp.float32, -bound, bound)
    w_hh = jax.random.uniform(k[1], (4 * hidden_size, hidden_size), jnp.float32, -bound, bound)
    b_ih = jax.random.uniform(k[2], (4 * hidden_size,), jnp.float32, -bound, bound)
    b_hh = jax.random.uniform(k[3], (4 * hidden_size,), jnp.float32, -bound, bound)
    # nn.Linear: weight (O, H), bias (O,)
    w_lin = jax.random.uniform(k[4], (output_size, hidden_size), jnp.float32, -bound, bound)
    b_lin = jax.random.uniform(k[5], (output_size,), jnp.float32, -bound, bound)
    return {
        "w_ih_t": w_ih.T,                               # (I, 4H)
        "w_hh_t": w_hh.T,                               # (H, 4H)
        "b_gates": (b_ih + b_hh).reshape(1, -1),        # (1, 4H)
        "w_lin_t": w_lin.T,                             # (H, O)
        "b_lin": b_lin.reshape(1, -1),                  # (1, O)
    }


def _reference(x, params, hidden, c):
    """Pure-JAX reference of the same forward (for sanity checking)."""
    H = params["w_hh_t"].shape[0]
    h = hidden.reshape(1, H)
    cc = c.reshape(1, H)
    for t in range(x.shape[0]):
        gates = (x[t:t + 1] @ params["w_ih_t"] + h @ params["w_hh_t"]
                 + params["b_gates"])
        i = jax.nn.sigmoid(gates[:, 0 * H:1 * H])
        f = jax.nn.sigmoid(gates[:, 1 * H:2 * H])
        g = jnp.tanh(gates[:, 2 * H:3 * H])
        o = jax.nn.sigmoid(gates[:, 3 * H:4 * H])
        cc = f * cc + i * g
        h = o * jnp.tanh(cc)
    logits = h @ params["w_lin_t"] + params["b_lin"]
    return jax.nn.log_softmax(logits, axis=-1), h, cc


if __name__ == "__main__":
    seq_len = 8
    input_size = 16     # e.g. n_letters in the original script
    hidden_size = 32
    output_size = 8     # number of categories

    key = jax.random.PRNGKey(0)
    k_param, k_x = jax.random.split(key)
    params = init_params(k_param, input_size, hidden_size, output_size)

    # one "line tensor": (seq_len, input_size); forward unsqueezes to batch=1
    x = jax.random.normal(k_x, (seq_len, input_size), jnp.float32)
    # inithidden(): zeros of shape (num_layers, 1, hidden_size)
    hidden0 = jnp.zeros((1, 1, hidden_size), jnp.float32)
    c0 = jnp.zeros((1, 1, hidden_size), jnp.float32)

    logp, hn, cn = my_lstm_forward(x, params, hidden0, c0)
    jax.block_until_ready((logp, hn, cn))

    # sanity check against pure-JAX reference
    ref_logp, ref_h, ref_c = _reference(x, params, hidden0, c0)
    assert logp.shape == (1, output_size)
    assert hn.shape == (1, 1, hidden_size) and cn.shape == (1, 1, hidden_size)
    assert jnp.allclose(logp, ref_logp, atol=1e-5)
    assert jnp.allclose(hn.reshape(1, -1), ref_h, atol=1e-5)
    assert jnp.allclose(cn.reshape(1, -1), ref_c, atol=1e-5)

    print("KERNEL_OK")
</pallas_src>

<mosaic_0001>
module attributes {stable_mosaic.version = 11 : i64} {
  func.func @_lstm_kernel(%arg0: memref<8x16xf32, #tpu.memory_space<vmem>>, %arg1: memref<16x128xf32, #tpu.memory_space<vmem>>, %arg2: memref<32x128xf32, #tpu.memory_space<vmem>>, %arg3: memref<1x128xf32, #tpu.memory_space<vmem>>, %arg4: memref<1x32xf32, #tpu.memory_space<vmem>>, %arg5: memref<1x32xf32, #tpu.memory_space<vmem>>, %arg6: memref<32x8xf32, #tpu.memory_space<vmem>>, %arg7: memref<1x8xf32, #tpu.memory_space<vmem>>, %arg8: memref<1x8xf32, #tpu.memory_space<vmem>>, %arg9: memref<1x32xf32, #tpu.memory_space<vmem>>, %arg10: memref<1x32xf32, #tpu.memory_space<vmem>>, %arg11: memref<8x128xf32, #tpu.memory_space<vmem>>, %arg12: memref<1x32xf32, #tpu.memory_space<vmem>>, %arg13: memref<1x32xf32, #tpu.memory_space<vmem>>) attributes {dimension_semantics = [], scalar_prefetch = 0 : i64, scratch_operands = 3 : i64, tpu.core_type = #tpu.core_type<tc>} {
    %c0 = arith.constant 0 : index
    %c0_0 = arith.constant 0 : index
    %0 = vector.load %arg0[%c0, %c0_0] : memref<8x16xf32, #tpu.memory_space<vmem>>, vector<8x16xf32>
    %c0_1 = arith.constant 0 : index
    %c0_2 = arith.constant 0 : index
    %1 = vector.load %arg1[%c0_1, %c0_2] : memref<16x128xf32, #tpu.memory_space<vmem>>, vector<16x128xf32>
    %cst = arith.constant dense<0.000000e+00> : vector<8x128xf32>
    %2 = tpu.matmul %0, %1, %cst {dimension_numbers = #tpu.dot_dimension_numbers<[1], [0], [0], [1], [0, 0, 1, 1], [], []>} : vector<8x16xf32>, vector<16x128xf32>, vector<8x128xf32> -> vector<8x128xf32>
    %c0_3 = arith.constant 0 : index
    %c0_4 = arith.constant 0 : index
    %3 = vector.load %arg3[%c0_3, %c0_4] : memref<1x128xf32, #tpu.memory_space<vmem>>, vector<1x128xf32>
    %4 = vector.broadcast %3 : vector<1x128xf32> to vector<8x128xf32>
    %5 = arith.addf %2, %4 : vector<8x128xf32>
    %c0_5 = arith.constant 0 : index
    %c0_6 = arith.constant 0 : index
    %6 = vector.load %arg11[%c0_5, %c0_6] : memref<8x128xf32, #tpu.memory_space<vmem>>, vector<8x128xf32>
    tpu.vector_store %arg11[%c0_5, %c0_6], %5 {strides = array<i32>} : memref<8x128xf32, #tpu.memory_space<vmem>>, vector<8x128xf32>,
    %c0_7 = arith.constant 0 : index
    %c0_8 = arith.constant 0 : index
    %7 = vector.load %arg4[%c0_7, %c0_8] : memref<1x32xf32, #tpu.memory_space<vmem>>, vector<1x32xf32>
    %c0_9 = arith.constant 0 : index
    %c0_10 = arith.constant 0 : index
    %8 = vector.load %arg12[%c0_9, %c0_10] : memref<1x32xf32, #tpu.memory_space<vmem>>, vector<1x32xf32>
    tpu.vector_store %arg12[%c0_9, %c0_10], %7 {strides = array<i32>} : memref<1x32xf32, #tpu.memory_space<vmem>>, vector<1x32xf32>,
    %c0_11 = arith.constant 0 : index
    %c0_12 = arith.constant 0 : index
    %9 = vector.load %arg5[%c0_11, %c0_12] : memref<1x32xf32, #tpu.memory_space<vmem>>, vector<1x32xf32>
    %c0_13 = arith.constant 0 : index
    %c0_14 = arith.constant 0 : index
    %10 = vector.load %arg13[%c0_13, %c0_14] : memref<1x32xf32, #tpu.memory_space<vmem>>, vector<1x32xf32>
    tpu.vector_store %arg13[%c0_13, %c0_14], %9 {strides = array<i32>} : memref<1x32xf32, #tpu.memory_space<vmem>>, vector<1x32xf32>,
    %c0_i32 = arith.constant 0 : i32
    %c0_15 = arith.constant 0 : index
    %c0_16 = arith.constant 0 : index
    %11 = vector.load %arg12[%c0_15, %c0_16] : memref<1x32xf32, #tpu.memory_space<vmem>>, vector<1x32xf32>
    %c0_17 = arith.constant 0 : index
    %c0_18 = arith.constant 0 : index
    %12 = vector.load %arg2[%c0_17, %c0_18] : memref<32x128xf32, #tpu.memory_space<vmem>>, vector<32x128xf32>
    %cst_19 = arith.constant dense<0.000000e+00> : vector<1x128xf32>
    %13 = tpu.matmul %11, %12, %cst_19 {dimension_numbers = #tpu.dot_dimension_numbers<[1], [0], [0], [1], [0, 0, 1, 1], [], []>} : vector<1x32xf32>, vector<32x128xf32>, vector<1x128xf32> -> vector<1x128xf32>
    %14 = arith.index_cast %c0_i32 : i32 to index
    %c0_20 = arith.constant 0 : index
    %15 = vector.load %arg11[%14, %c0_20] : memref<8x128xf32, #tpu.memory_space<vmem>>, vector<1x128xf32>
    %16 = arith.addf %13, %15 : vector<1x128xf32>
    %17 = arith.negf %16 : vector<1x128xf32>
    %18 = math.exp %17 : vector<1x128xf32>
    %cst_21 = arith.constant 1.000000e+00 : f32
    %19 = vector.broadcast %cst_21 : f32 to vector<1x128xf32>
    %20 = arith.addf %19, %18 : vector<1x128xf32>
    %21 = arith.divf %19, %20 : vector<1x128xf32>
    %22 = math.tanh %16 : vector<1x128xf32>
    %23 = vector.extract_strided_slice %21 {offsets = [0, 0], sizes = [1, 32], strides = [1, 1]} : vector<1x128xf32> to vector<1x32xf32>
    %24 = vector.extract_strided_slice %21 {offsets = [0, 32], sizes = [1, 32], strides = [1, 1]} : vector<1x128xf32> to vector<1x32xf32>
    %25 = vector.extract_strided_slice %22 {offsets = [0, 64], sizes = [1, 32], strides = [1, 1]} : vector<1x128xf32> to vector<1x32xf32>
    %26 = vector.extract_strided_slice %21 {offsets = [0, 96], sizes = [1, 32], strides = [1, 1]} : vector<1x128xf32> to vector<1x32xf32>
    %c0_22 = arith.constant 0 : index
    %c0_23 = arith.constant 0 : index
    %27 = vector.load %arg13[%c0_22, %c0_23] : memref<1x32xf32, #tpu.memory_space<vmem>>, vector<1x32xf32>
    %28 = arith.mulf %24, %27 : vector<1x32xf32>
    %29 = arith.mulf %23, %25 : vector<1x32xf32>
    %30 = arith.addf %28, %29 : vector<1x32xf32>
    %31 = math.tanh %30 : vector<1x32xf32>
    %32 = arith.mulf %26, %31 : vector<1x32xf32>
    %c0_24 = arith.constant 0 : index
    %c0_25 = arith.constant 0 : index
    %33 = vector.load %arg13[%c0_24, %c0_25] : memref<1x32xf32, #tpu.memory_space<vmem>>, vector<1x32xf32>
    tpu.vector_store %arg13[%c0_24, %c0_25], %30 {strides = array<i32>} : memref<1x32xf32, #tpu.memory_space<vmem>>, vector<1x32xf32>,
    %c0_26 = arith.constant 0 : index
    %c0_27 = arith.constant 0 : index
    %34 = vector.load %arg12[%c0_26, %c0_27] : memref<1x32xf32, #tpu.memory_space<vmem>>, vector<1x32xf32>
    tpu.vector_store %arg12[%c0_26, %c0_27], %32 {strides = array<i32>} : memref<1x32xf32, #tpu.memory_space<vmem>>, vector<1x32xf32>,
    %c1_i32 = arith.constant 1 : i32
    %c0_28 = arith.constant 0 : index
    %c0_29 = arith.constant 0 : index
    %35 = vector.load %arg12[%c0_28, %c0_29] : memref<1x32xf32, #tpu.memory_space<vmem>>, vector<1x32xf32>
    %c0_30 = arith.constant 0 : index
    %c0_31 = arith.constant 0 : index
    %36 = vector.load %arg2[%c0_30, %c0_31] : memref<32x128xf32, #tpu.memory_space<vmem>>, vector<32x128xf32>
    %cst_32 = arith.constant dense<0.000000e+00> : vector<1x128xf32>
    %37 = tpu.matmul %35, %36, %cst_32 {dimension_numbers = #tpu.dot_dimension_numbers<[1], [0], [0], [1], [0, 0, 1, 1], [], []>} : vector<1x32xf32>, vector<32x128xf32>, vector<1x128xf32> -> vector<1x128xf32>
    %38 = arith.index_cast %c1_i32 : i32 to index
    %c0_33 = arith.constant 0 : index
    %39 = vector.load %arg11[%38, %c0_33] : memref<8x128xf32, #tpu.memory_space<vmem>>, vector<1x128xf32>
    %40 = arith.addf %37, %39 : vector<1x128xf32>
    %41 = arith.negf %40 : vector<1x128xf32>
    %42 = math.exp %41 : vector<1x128xf32>
    %cst_34 = arith.constant 1.000000e+00 : f32
    %43 = vector.broadcast %cst_34 : f32 to vector<1x128xf32>
    %44 = arith.addf %43, %42 : vector<1x128xf32>
    %45 = arith.divf %43, %44 : vector<1x128xf32>
    %46 = math.tanh %40 : vector<1x128xf32>
    %47 = vector.extract_strided_slice %45 {offsets = [0, 0], sizes = [1, 32], strides = [1, 1]} : vector<1x128xf32> to vector<1x32xf32>
    %48 = vector.extract_strided_slice %45 {offsets = [0, 32], sizes = [1, 32], strides = [1, 1]} : vector<1x128xf32> to vector<1x32xf32>
    %49 = vector.extract_strided_slice %46 {offsets = [0, 64], sizes = [1, 32], strides = [1, 1]} : vector<1x128xf32> to vector<1x32xf32>
    %50 = vector.extract_strided_slice %45 {offsets = [0, 96], sizes = [1, 32], strides = [1, 1]} : vector<1x128xf32> to vector<1x32xf32>
    %c0_35 = arith.constant 0 : index
    %c0_36 = arith.constant 0 : index
    %51 = vector.load %arg13[%c0_35, %c0_36] : memref<1x32xf32, #tpu.memory_space<vmem>>, vector<1x32xf32>
    %52 = arith.mulf %48, %51 : vector<1x32xf32>
    %53 = arith.mulf %47, %49 : vector<1x32xf32>
    %54 = arith.addf %52, %53 : vector<1x32xf32>
    %55 = math.tanh %54 : vector<1x32xf32>
    %56 = arith.mulf %50, %55 : vector<1x32xf32>
    %c0_37 = arith.constant 0 : index
    %c0_38 = arith.constant 0 : index
    %57 = vector.load %arg13[%c0_37, %c0_38] : memref<1x32xf32, #tpu.memory_space<vmem>>, vector<1x32xf32>
    tpu.vector_store %arg13[%c0_37, %c0_38], %54 {strides = array<i32>} : memref<1x32xf32, #tpu.memory_space<vmem>>, vector<1x32xf32>,
    %c0_39 = arith.constant 0 : index
    %c0_40 = arith.constant 0 : index
    %58 = vector.load %arg12[%c0_39, %c0_40] : memref<1x32xf32, #tpu.memory_space<vmem>>, vector<1x32xf32>
    tpu.vector_store %arg12[%c0_39, %c0_40], %56 {strides = array<i32>} : memref<1x32xf32, #tpu.memory_space<vmem>>, vector<1x32xf32>,
    %c2_i32 = arith.constant 2 : i32
    %c0_41 = arith.constant 0 : index
    %c0_42 = arith.constant 0 : index
    %59 = vector.load %arg12[%c0_41, %c0_42] : memref<1x32xf32, #tpu.memory_space<vmem>>, vector<1x32xf32>
    %c0_43 = arith.constant 0 : index
    %c0_44 = arith.constant 0 : index
    %60 = vector.load %arg2[%c0_43, %c0_44] : memref<32x128xf32, #tpu.memory_space<vmem>>, vector<32x128xf32>
    %cst_45 = arith.constant dense<0.000000e+00> : vector<1x128xf32>
    %61 = tpu.matmul %59, %60, %cst_45 {dimension_numbers = #tpu.dot_dimension_numbers<[1], [0], [0], [1], [0, 0, 1, 1], [], []>} : vector<1x32xf32>, vector<32x128xf32>, vector<1x128xf32> -> vector<1x128xf32>
    %62 = arith.index_cast %c2_i32 : i32 to index
    %c0_46 = arith.constant 0 : index
    %63 = vector.load %arg11[%62, %c0_46] : memref<8x128xf32, #tpu.memory_space<vmem>>, vector<1x128xf32>
    %64 = arith.addf %61, %63 : vector<1x128xf32>
    %65 = arith.negf %64 : vector<1x128xf32>
    %66 = math.exp %65 : vector<1x128xf32>
    %cst_47 = arith.constant 1.000000e+00 : f32
    %67 = vector.broadcast %cst_47 : f32 to vector<1x128xf32>
    %68 = arith.addf %67, %66 : vector<1x128xf32>
    %69 = arith.divf %67, %68 : vector<1x128xf32>
    %70 = math.tanh %64 : vector<1x128xf32>
    %71 = vector.extract_strided_slice %69 {offsets = [0, 0], sizes = [1, 32], strides = [1, 1]} : vector<1x128xf32> to vector<1x32xf32>
    %72 = vector.extract_strided_slice %69 {offsets = [0, 32], sizes = [1, 32], strides = [1, 1]} : vector<1x128xf32> to vector<1x32xf32>
    %73 = vector.extract_strided_slice %70 {offsets = [0, 64], sizes = [1, 32], strides = [1, 1]} : vector<1x128xf32> to vector<1x32xf32>
    %74 = vector.extract_strided_slice %69 {offsets = [0, 96], sizes = [1, 32], strides = [1, 1]} : vector<1x128xf32> to vector<1x32xf32>
    %c0_48 = arith.constant 0 : index
    %c0_49 = arith.constant 0 : index
    %75 = vector.load %arg13[%c0_48, %c0_49] : memref<1x32xf32, #tpu.memory_space<vmem>>, vector<1x32xf32>
    %76 = arith.mulf %72, %75 : vector<1x32xf32>
    %77 = arith.mulf %71, %73 : vector<1x32xf32>
    %78 = arith.addf %76, %77 : vector<1x32xf32>
    %79 = math.tanh %78 : vector<1x32xf32>
    %80 = arith.mulf %74, %79 : vector<1x32xf32>
    %c0_50 = arith.constant 0 : index
    %c0_51 = arith.constant 0 : index
    %81 = vector.load %arg13[%c0_50, %c0_51] : memref<1x32xf32, #tpu.memory_space<vmem>>, vector<1x32xf32>
    tpu.vector_store %arg13[%c0_50, %c0_51], %78 {strides = array<i32>} : memref<1x32xf32, #tpu.memory_space<vmem>>, vector<1x32xf32>,
    %c0_52 = arith.constant 0 : index
    %c0_53 = arith.constant 0 : index
    %82 = vector.load %arg12[%c0_52, %c0_53] : memref<1x32xf32, #tpu.memory_space<vmem>>, vector<1x32xf32>
    tpu.vector_store %arg12[%c0_52, %c0_53], %80 {strides = array<i32>} : memref<1x32xf32, #tpu.memory_space<vmem>>, vector<1x32xf32>,
    %c3_i32 = arith.constant 3 : i32
    %c0_54 = arith.constant 0 : index
    %c0_55 = arith.constant 0 : index
    %83 = vector.load %arg12[%c0_54, %c0_55] : memref<1x32xf32, #tpu.memory_space<vmem>>, vector<1x32xf32>
    %c0_56 = arith.constant 0 : index
    %c0_57 = arith.constant 0 : index
    %84 = vector.load %arg2[%c0_56, %c0_57] : memref<32x128xf32, #tpu.memory_space<vmem>>, vector<32x128xf32>
    %cst_58 = arith.constant dense<0.000000e+00> : vector<1x128xf32>
    %85 = tpu.matmul %83, %84, %cst_58 {dimension_numbers = #tpu.dot_dimension_numbers<[1], [0], [0], [1], [0, 0, 1, 1], [], []>} : vector<1x32xf32>, vector<32x128xf32>, vector<1x128xf32> -> vector<1x128xf32>
    %86 = arith.index_cast %c3_i32 : i32 to index
    %c0_59 = arith.constant 0 : index
    %87 = vector.load %arg11[%86, %c0_59] : memref<8x128xf32, #tpu.memory_space<vmem>>, vector<1x128xf32>
    %88 = arith.addf %85, %87 : vector<1x128xf32>
    %89 = arith.negf %88 : vector<1x128xf32>
    %90 = math.exp %89 : vector<1x128xf32>
    %cst_60 = arith.constant 1.000000e+00 : f32
    %91 = vector.broadcast %cst_60 : f32 to vector<1x128xf32>
    %92 = arith.addf %91, %90 : vector<1x128xf32>
    %93 = arith.divf %91, %92 : vector<1x128xf32>
    %94 = math.tanh %88 : vector<1x128xf32>
    %95 = vector.extract_strided_slice %93 {offsets = [0, 0], sizes = [1, 32], strides = [1, 1]} : vector<1x128xf32> to vector<1x32xf32>
    %96 = vector.extract_strided_slice %93 {offsets = [0, 32], sizes = [1, 32], strides = [1, 1]} : vector<1x128xf32> to vector<1x32xf32>
    %97 = vector.extract_strided_slice %94 {offsets = [0, 64], sizes = [1, 32], strides = [1, 1]} : vector<1x128xf32> to vector<1x32xf32>
    %98 = vector.extract_strided_slice %93 {offsets = [0, 96], sizes = [1, 32], strides = [1, 1]} : vector<1x128xf32> to vector<1x32xf32>
    %c0_61 = arith.constant 0 : index
    %c0_62 = arith.constant 0 : index
    %99 = vector.load %arg13[%c0_61, %c0_62] : memref<1x32xf32, #tpu.memory_space<vmem>>, vector<1x32xf32>
    %100 = arith.mulf %96, %99 : vector<1x32xf32>
    %101 = arith.mulf %95, %97 : vector<1x32xf32>
    %102 = arith.addf %100, %101 : vector<1x32xf32>
    %103 = math.tanh %102 : vector<1x32xf32>
    %104 = arith.mulf %98, %103 : vector<1x32xf32>
    %c0_63 = arith.constant 0 : index
    %c0_64 = arith.constant 0 : index
    %105 = vector.load %arg13[%c0_63, %c0_64] : memref<1x32xf32, #tpu.memory_space<vmem>>, vector<1x32xf32>
    tpu.vector_store %arg13[%c0_63, %c0_64], %102 {strides = array<i32>} : memref<1x32xf32, #tpu.memory_space<vmem>>, vector<1x32xf32>,
    %c0_65 = arith.constant 0 : index
    %c0_66 = arith.constant 0 : index
    %106 = vector.load %arg12[%c0_65, %c0_66] : memref<1x32xf32, #tpu.memory_space<vmem>>, vector<1x32xf32>
    tpu.vector_store %arg12[%c0_65, %c0_66], %104 {strides = array<i32>} : memref<1x32xf32, #tpu.memory_space<vmem>>, vector<1x32xf32>,
    %c4_i32 = arith.constant 4 : i32
    %c0_67 = arith.constant 0 : index
    %c0_68 = arith.constant 0 : index
    %107 = vector.load %arg12[%c0_67, %c0_68] : memref<1x32xf32, #tpu.memory_space<vmem>>, vector<1x32xf32>
    %c0_69 = arith.constant 0 : index
    %c0_70 = arith.constant 0 : index
    %108 = vector.load %arg2[%c0_69, %c0_70] : memref<32x128xf32, #tpu.memory_space<vmem>>, vector<32x128xf32>
    %cst_71 = arith.constant dense<0.000000e+00> : vector<1x128xf32>
    %109 = tpu.matmul %107, %108, %cst_71 {dimension_numbers = #tpu.dot_dimension_numbers<[1], [0], [0], [1], [0, 0, 1, 1], [], []>} : vector<1x32xf32>, vector<32x128xf32>, vector<1x128xf32> -> vector<1x128xf32>
    %110 = arith.index_cast %c4_i32 : i32 to index
    %c0_72 = arith.constant 0 : index
    %111 = vector.load %arg11[%110, %c0_72] : memref<8x128xf32, #tpu.memory_space<vmem>>, vector<1x128xf32>
    %112 = arith.addf %109, %111 : vector<1x128xf32>
    %113 = arith.negf %112 : vector<1x128xf32>
    %114 = math.exp %113 : vector<1x128xf32>
    %cst_73 = arith.constant 1.000000e+00 : f32
    %115 = vector.broadcast %cst_73 : f32 to vector<1x128xf32>
    %116 = arith.addf %115, %114 : vector<1x128xf32>
    %117 = arith.divf %115, %116 : vector<1x128xf32>
    %118 = math.tanh %112 : vector<1x128xf32>
    %119 = vector.extract_strided_slice %117 {offsets = [0, 0], sizes = [1, 32], strides = [1, 1]} : vector<1x128xf32> to vector<1x32xf32>
    %120 = vector.extract_strided_slice %117 {offsets = [0, 32], sizes = [1, 32], strides = [1, 1]} : vector<1x128xf32> to vector<1x32xf32>
    %121 = vector.extract_strided_slice %118 {offsets = [0, 64], sizes = [1, 32], strides = [1, 1]} : vector<1x128xf32> to vector<1x32xf32>
    %122 = vector.extract_strided_slice %117 {offsets = [0, 96], sizes = [1, 32], strides = [1, 1]} : vector<1x128xf32> to vector<1x32xf32>
    %c0_74 = arith.constant 0 : index
    %c0_75 = arith.constant 0 : index
    %123 = vector.load %arg13[%c0_74, %c0_75] : memref<1x32xf32, #tpu.memory_space<vmem>>, vector<1x32xf32>
    %124 = arith.mulf %120, %123 : vector<1x32xf32>
    %125 = arith.mulf %119, %121 : vector<1x32xf32>
    %126 = arith.addf %124, %125 : vector<1x32xf32>
    %127 = math.tanh %126 : vector<1x32xf32>
    %128 = arith.mulf %122, %127 : vector<1x32xf32>
    %c0_76 = arith.constant 0 : index
    %c0_77 = arith.constant 0 : index
    %129 = vector.load %arg13[%c0_76, %c0_77] : memref<1x32xf32, #tpu.memory_space<vmem>>, vector<1x32xf32>
    tpu.vector_store %arg13[%c0_76, %c0_77], %126 {strides = array<i32>} : memref<1x32xf32, #tpu.memory_space<vmem>>, vector<1x32xf32>,
    %c0_78 = arith.constant 0 : index
    %c0_79 = arith.constant 0 : index
    %130 = vector.load %arg12[%c0_78, %c0_79] : memref<1x32xf32, #tpu.memory_space<vmem>>, vector<1x32xf32>
    tpu.vector_store %arg12[%c0_78, %c0_79], %128 {strides = array<i32>} : memref<1x32xf32, #tpu.memory_space<vmem>>, vector<1x32xf32>,
    %c5_i32 = arith.constant 5 : i32
    %c0_80 = arith.constant 0 : index
    %c0_81 = arith.constant 0 : index
    %131 = vector.load %arg12[%c0_80, %c0_81] : memref<1x32xf32, #tpu.memory_space<vmem>>, vector<1x32xf32>
    %c0_82 = arith.constant 0 : index
    %c0_83 = arith.constant 0 : index
    %132 = vector.load %arg2[%c0_82, %c0_83] : memref<32x128xf32, #tpu.memory_space<vmem>>, vector<32x128xf32>
    %cst_84 = arith.constant dense<0.000000e+00> : vector<1x128xf32>
    %133 = tpu.matmul %131, %132, %cst_84 {dimension_numbers = #tpu.dot_dimension_numbers<[1], [0], [0], [1], [0, 0, 1, 1], [], []>} : vector<1x32xf32>, vector<32x128xf32>, vector<1x128xf32> -> vector<1x128xf32>
    %134 = arith.index_cast %c5_i32 : i32 to index
    %c0_85 = arith.constant 0 : index
    %135 = vector.load %arg11[%134, %c0_85] : memref<8x128xf32, #tpu.memory_space<vmem>>, vector<1x128xf32>
    %136 = arith.addf %133, %135 : vector<1x128xf32>
    %137 = arith.negf %136 : vector<1x128xf32>
    %138 = math.exp %137 : vector<1x128xf32>
    %cst_86 = arith.constant 1.000000e+00 : f32
    %139 = vector.broadcast %cst_86 : f32 to vector<1x128xf32>
    %140 = arith.addf %139, %138 : vector<1x128xf32>
    %141 = arith.divf %139, %140 : vector<1x128xf32>
    %142 = math.tanh %136 : vector<1x128xf32>
    %143 = vector.extract_strided_slice %141 {offsets = [0, 0], sizes = [1, 32], strides = [1, 1]} : vector<1x128xf32> to vector<1x32xf32>
    %144 = vector.extract_strided_slice %141 {offsets = [0, 32], sizes = [1, 32], strides = [1, 1]} : vector<1x128xf32> to vector<1x32xf32>
    %145 = vector.extract_strided_slice %142 {offsets = [0, 64], sizes = [1, 32], strides = [1, 1]} : vector<1x128xf32> to vector<1x32xf32>
    %146 = vector.extract_strided_slice %141 {offsets = [0, 96], sizes = [1, 32], strides = [1, 1]} : vector<1x128xf32> to vector<1x32xf32>
    %c0_87 = arith.constant 0 : index
    %c0_88 = arith.constant 0 : index
    %147 = vector.load %arg13[%c0_87, %c0_88] : memref<1x32xf32, #tpu.memory_space<vmem>>, vector<1x32xf32>
    %148 = arith.mulf %144, %147 : vector<1x32xf32>
    %149 = arith.mulf %143, %145 : vector<1x32xf32>
    %150 = arith.addf %148, %149 : vector<1x32xf32>
    %151 = math.tanh %150 : vector<1x32xf32>
    %152 = arith.mulf %146, %151 : vector<1x32xf32>
    %c0_89 = arith.constant 0 : index
    %c0_90 = arith.constant 0 : index
    %153 = vector.load %arg13[%c0_89, %c0_90] : memref<1x32xf32, #tpu.memory_space<vmem>>, vector<1x32xf32>
    tpu.vector_store %arg13[%c0_89, %c0_90], %150 {strides = array<i32>} : memref<1x32xf32, #tpu.memory_space<vmem>>, vector<1x32xf32>,
    %c0_91 = arith.constant 0 : index
    %c0_92 = arith.constant 0 : index
    %154 = vector.load %arg12[%c0_91, %c0_92] : memref<1x32xf32, #tpu.memory_space<vmem>>, vector<1x32xf32>
    tpu.vector_store %arg12[%c0_91, %c0_92], %152 {strides = array<i32>} : memref<1x32xf32, #tpu.memory_space<vmem>>, vector<1x32xf32>,
    %c6_i32 = arith.constant 6 : i32
    %c0_93 = arith.constant 0 : index
    %c0_94 = arith.constant 0 : index
    %155 = vector.load %arg12[%c0_93, %c0_94] : memref<1x32xf32, #tpu.memory_space<vmem>>, vector<1x32xf32>
    %c0_95 = arith.constant 0 : index
    %c0_96 = arith.constant 0 : index
    %156 = vector.load %arg2[%c0_95, %c0_96] : memref<32x128xf32, #tpu.memory_space<vmem>>, vector<32x128xf32>
    %cst_97 = arith.constant dense<0.000000e+00> : vector<1x128xf32>
    %157 = tpu.matmul %155, %156, %cst_97 {dimension_numbers = #tpu.dot_dimension_numbers<[1], [0], [0], [1], [0, 0, 1, 1], [], []>} : vector<1x32xf32>, vector<32x128xf32>, vector<1x128xf32> -> vector<1x128xf32>
    %158 = arith.index_cast %c6_i32 : i32 to index
    %c0_98 = arith.constant 0 : index
    %159 = vector.load %arg11[%158, %c0_98] : memref<8x128xf32, #tpu.memory_space<vmem>>, vector<1x128xf32>
    %160 = arith.addf %157, %159 : vector<1x128xf32>
    %161 = arith.negf %160 : vector<1x128xf32>
    %162 = math.exp %161 : vector<1x128xf32>
    %cst_99 = arith.constant 1.000000e+00 : f32
    %163 = vector.broadcast %cst_99 : f32 to vector<1x128xf32>
    %164 = arith.addf %163, %162 : vector<1x128xf32>
    %165 = arith.divf %163, %164 : vector<1x128xf32>
    %166 = math.tanh %160 : vector<1x128xf32>
    %167 = vector.extract_strided_slice %165 {offsets = [0, 0], sizes = [1, 32], strides = [1, 1]} : vector<1x128xf32> to vector<1x32xf32>
    %168 = vector.extract_strided_slice %165 {offsets = [0, 32], sizes = [1, 32], strides = [1, 1]} : vector<1x128xf32> to vector<1x32xf32>
    %169 = vector.extract_strided_slice %166 {offsets = [0, 64], sizes = [1, 32], strides = [1, 1]} : vector<1x128xf32> to vector<1x32xf32>
    %170 = vector.extract_strided_slice %165 {offsets = [0, 96], sizes = [1, 32], strides = [1, 1]} : vector<1x128xf32> to vector<1x32xf32>
    %c0_100 = arith.constant 0 : index
    %c0_101 = arith.constant 0 : index
    %171 = vector.load %arg13[%c0_100, %c0_101] : memref<1x32xf32, #tpu.memory_space<vmem>>, vector<1x32xf32>
    %172 = arith.mulf %168, %171 : vector<1x32xf32>
    %173 = arith.mulf %167, %169 : vector<1x32xf32>
    %174 = arith.addf %172, %173 : vector<1x32xf32>
    %175 = math.tanh %174 : vector<1x32xf32>
    %176 = arith.mulf %170, %175 : vector<1x32xf32>
    %c0_102 = arith.constant 0 : index
    %c0_103 = arith.constant 0 : index
    %177 = vector.load %arg13[%c0_102, %c0_103] : memref<1x32xf32, #tpu.memory_space<vmem>>, vector<1x32xf32>
    tpu.vector_store %arg13[%c0_102, %c0_103], %174 {strides = array<i32>} : memref<1x32xf32, #tpu.memory_space<vmem>>, vector<1x32xf32>,
    %c0_104 = arith.constant 0 : index
    %c0_105 = arith.constant 0 : index
    %178 = vector.load %arg12[%c0_104, %c0_105] : memref<1x32xf32, #tpu.memory_space<vmem>>, vector<1x32xf32>
    tpu.vector_store %arg12[%c0_104, %c0_105], %176 {strides = array<i32>} : memref<1x32xf32, #tpu.memory_space<vmem>>, vector<1x32xf32>,
    %c7_i32 = arith.constant 7 : i32
    %c0_106 = arith.constant 0 : index
    %c0_107 = arith.constant 0 : index
    %179 = vector.load %arg12[%c0_106, %c0_107] : memref<1x32xf32, #tpu.memory_space<vmem>>, vector<1x32xf32>
    %c0_108 = arith.constant 0 : index
    %c0_109 = arith.constant 0 : index
    %180 = vector.load %arg2[%c0_108, %c0_109] : memref<32x128xf32, #tpu.memory_space<vmem>>, vector<32x128xf32>
    %cst_110 = arith.constant dense<0.000000e+00> : vector<1x128xf32>
    %181 = tpu.matmul %179, %180, %cst_110 {dimension_numbers = #tpu.dot_dimension_numbers<[1], [0], [0], [1], [0, 0, 1, 1], [], []>} : vector<1x32xf32>, vector<32x128xf32>, vector<1x128xf32> -> vector<1x128xf32>
    %182 = arith.index_cast %c7_i32 : i32 to index
    %c0_111 = arith.constant 0 : index
    %183 = vector.load %arg11[%182, %c0_111] : memref<8x128xf32, #tpu.memory_space<vmem>>, vector<1x128xf32>
    %184 = arith.addf %181, %183 : vector<1x128xf32>
    %185 = arith.negf %184 : vector<1x128xf32>
    %186 = math.exp %185 : vector<1x128xf32>
    %cst_112 = arith.constant 1.000000e+00 : f32
    %187 = vector.broadcast %cst_112 : f32 to vector<1x128xf32>
    %188 = arith.addf %187, %186 : vector<1x128xf32>
    %189 = arith.divf %187, %188 : vector<1x128xf32>
    %190 = math.tanh %184 : vector<1x128xf32>
    %191 = vector.extract_strided_slice %189 {offsets = [0, 0], sizes = [1, 32], strides = [1, 1]} : vector<1x128xf32> to vector<1x32xf32>
    %192 = vector.extract_strided_slice %189 {offsets = [0, 32], sizes = [1, 32], strides = [1, 1]} : vector<1x128xf32> to vector<1x32xf32>
    %193 = vector.extract_strided_slice %190 {offsets = [0, 64], sizes = [1, 32], strides = [1, 1]} : vector<1x128xf32> to vector<1x32xf32>
    %194 = vector.extract_strided_slice %189 {offsets = [0, 96], sizes = [1, 32], strides = [1, 1]} : vector<1x128xf32> to vector<1x32xf32>
    %c0_113 = arith.constant 0 : index
    %c0_114 = arith.constant 0 : index
    %195 = vector.load %arg13[%c0_113, %c0_114] : memref<1x32xf32, #tpu.memory_space<vmem>>, vector<1x32xf32>
    %196 = arith.mulf %192, %195 : vector<1x32xf32>
    %197 = arith.mulf %191, %193 : vector<1x32xf32>
    %198 = arith.addf %196, %197 : vector<1x32xf32>
    %199 = math.tanh %198 : vector<1x32xf32>
    %200 = arith.mulf %194, %199 : vector<1x32xf32>
    %c0_115 = arith.constant 0 : index
    %c0_116 = arith.constant 0 : index
    %201 = vector.load %arg13[%c0_115, %c0_116] : memref<1x32xf32, #tpu.memory_space<vmem>>, vector<1x32xf32>
    tpu.vector_store %arg13[%c0_115, %c0_116], %198 {strides = array<i32>} : memref<1x32xf32, #tpu.memory_space<vmem>>, vector<1x32xf32>,
    %c0_117 = arith.constant 0 : index
    %c0_118 = arith.constant 0 : index
    %202 = vector.load %arg12[%c0_117, %c0_118] : memref<1x32xf32, #tpu.memory_space<vmem>>, vector<1x32xf32>
    tpu.vector_store %arg12[%c0_117, %c0_118], %200 {strides = array<i32>} : memref<1x32xf32, #tpu.memory_space<vmem>>, vector<1x32xf32>,
    %c8_i32 = arith.constant 8 : i32
    %c0_119 = arith.constant 0 : index
    %c0_120 = arith.constant 0 : index
    %203 = vector.load %arg12[%c0_119, %c0_120] : memref<1x32xf32, #tpu.memory_space<vmem>>, vector<1x32xf32>
    %c0_121 = arith.constant 0 : index
    %c0_122 = arith.constant 0 : index
    %204 = vector.load %arg6[%c0_121, %c0_122] : memref<32x8xf32, #tpu.memory_space<vmem>>, vector<32x8xf32>
    %cst_123 = arith.constant dense<0.000000e+00> : vector<1x8xf32>
    %205 = tpu.matmul %203, %204, %cst_123 {dimension_numbers = #tpu.dot_dimension_numbers<[1], [0], [0], [1], [0, 0, 1, 1], [], []>} : vector<1x32xf32>, vector<32x8xf32>, vector<1x8xf32> -> vector<1x8xf32>
    %c0_124 = arith.constant 0 : index
    %c0_125 = arith.constant 0 : index
    %206 = vector.load %arg7[%c0_124, %c0_125] : memref<1x8xf32, #tpu.memory_space<vmem>>, vector<1x8xf32>
    %207 = arith.addf %205, %206 : vector<1x8xf32>
    %cst_126 = arith.constant dense<0xFF800000> : vector<1xf32>
    %208 = vector.multi_reduction <maximumf>, %207, %cst_126 [1] : vector<1x8xf32> to vector<1xf32>
    %209 = vector.shape_cast %208 : vector<1xf32> to vector<1x1xf32>
    %210 = vector.broadcast %209 : vector<1x1xf32> to vector<1x8xf32>
    %211 = arith.subf %207, %210 : vector<1x8xf32>
    %212 = math.exp %211 : vector<1x8xf32>
    %cst_127 = arith.constant dense<0.000000e+00> : vector<1xf32>
    %213 = vector.multi_reduction <add>, %212, %cst_127 [1] : vector<1x8xf32> to vector<1xf32>
    %214 = vector.shape_cast %213 : vector<1xf32> to vector<1x1xf32>
    %215 = math.log %214 : vector<1x1xf32>
    %216 = vector.broadcast %215 : vector<1x1xf32> to vector<1x8xf32>
    %217 = arith.subf %211, %216 : vector<1x8xf32>
    %c0_128 = arith.constant 0 : index
    %c0_129 = arith.constant 0 : index
    %218 = vector.load %arg8[%c0_128, %c0_129] : memref<1x8xf32, #tpu.memory_space<vmem>>, vector<1x8xf32>
    tpu.vector_store %arg8[%c0_128, %c0_129], %217 {strides = array<i32>} : memref<1x8xf32, #tpu.memory_space<vmem>>, vector<1x8xf32>,
    %c0_130 = arith.constant 0 : index
    %c0_131 = arith.constant 0 : index
    %219 = vector.load %arg12[%c0_130, %c0_131] : memref<1x32xf32, #tpu.memory_space<vmem>>, vector<1x32xf32>
    %c0_132 = arith.constant 0 : index
    %c0_133 = arith.constant 0 : index
    %220 = vector.load %arg9[%c0_132, %c0_133] : memref<1x32xf32, #tpu.memory_space<vmem>>, vector<1x32xf32>
    tpu.vector_store %arg9[%c0_132, %c0_133], %219 {strides = array<i32>} : memref<1x32xf32, #tpu.memory_space<vmem>>, vector<1x32xf32>,
    %c0_134 = arith.constant 0 : index
    %c0_135 = arith.constant 0 : index
    %221 = vector.load %arg13[%c0_134, %c0_135] : memref<1x32xf32, #tpu.memory_space<vmem>>, vector<1x32xf32>
    %c0_136 = arith.constant 0 : index
    %c0_137 = arith.constant 0 : index
    %222 = vector.load %arg10[%c0_136, %c0_137] : memref<1x32xf32, #tpu.memory_space<vmem>>, vector<1x32xf32>
    tpu.vector_store %arg10[%c0_136, %c0_137], %221 {strides = array<i32>} : memref<1x32xf32, #tpu.memory_space<vmem>>, vector<1x32xf32>,
    return
  }
}

</mosaic_0001>

<llo_original>
// kernel: tpu_custom_call.1
$region0: #{tpu_custom_call.1}
  #allocation0 [shape = 'u32[]', space=smem, size = 0x4, offset = 0x4, fixed_abs, tag = 'smem constant byte address 0x4 - core index']
  #allocation1 [shape = 'u32[72,128]{1,0:T(1,128)}', space=vmem, size = 0x9000, scoped, tag = 'internal scratch']
  #allocation2 [shape = 'f32[8,128]{1,0:T(8,128)}', space=vmem, size = 0x1000, scoped, tag = 'scratch operand']
  #allocation3 [shape = 'f32[1,32]{1,0:T(1,128)}', space=vmem, size = 0x200, scoped, tag = 'scratch operand']
  #allocation4 [shape = 'f32[1,32]{1,0:T(1,128)}', space=vmem, size = 0x200, scoped, tag = 'scratch operand']
  %s0 = inlined_call_operand.vmem [shape: f32[8,16], index: 0, kind: input, shape index: {}]
  %s1 = inlined_call_operand.hbm [shape: f32[16,128], index: 1, kind: input, shape index: {}]
  %s2 = inlined_call_operand.vmem [shape: f32[32,128], index: 2, kind: input, shape index: {}]
  %s3 = inlined_call_operand.vmem [shape: f32[1,128], index: 3, kind: input, shape index: {}]
  %s4 = inlined_call_operand.vmem [shape: f32[1,32], index: 4, kind: input, shape index: {}]
  %s5 = inlined_call_operand.vmem [shape: f32[1,32], index: 5, kind: input, shape index: {}]
  %s6 = inlined_call_operand.vmem [shape: f32[32,8], index: 6, kind: input, shape index: {}]
  %s7 = inlined_call_operand.vmem [shape: f32[1,8], index: 7, kind: input, shape index: {}]
  %s8 = inlined_call_operand.hbm [shape: f32[1,8], index: 8, kind: output, shape index: {0}]
  %s9 = inlined_call_operand.hbm [shape: f32[1,32], index: 9, kind: output, shape index: {1}]
  %s10 = inlined_call_operand.hbm [shape: f32[1,32], index: 10, kind: output, shape index: {2}]
  %11 = xla_tuple %s8, %s9, %s10
  %s12 = sld [smem:[#allocation0]]
  $region62: #{tpu_custom_call.1} parent=0
    _
  %s14 = ssub.s32 1, %s12
  %s15 = scalar_select 0, %s14, %s12
  $region1: #{tpu_custom_call.1} parent=0
    #allocation5 [shape = 'u8[8192]{0}', space=vmem, size = 0x2000, scoped, tag = 'input window, operand 1, single buffered']
    #allocation6 [shape = 's32[1]{0}', space=sflag, size = 0x4, scoped, tag = 'scoped memory for tpu_custom_call.1']
    #allocation7 [shape = 's32[1]{0}', space=sflag, size = 0x4, scoped, tag = 'scoped memory for tpu_custom_call.1']
    #allocation8 [shape = 'u8[512]{0}', space=vmem, size = 0x400, scoped, tag = 'output window, operand 0, single buffered']
    #allocation9 [shape = 'u8[512]{0}', space=vmem, size = 0x400, scoped, tag = 'output window, operand 1, single buffered']
    #allocation10 [shape = 's32[1]{0}', space=sflag, size = 0x4, scoped, tag = 'scoped memory for tpu_custom_call.1']
    #allocation11 [shape = 'u8[512]{0}', space=vmem, size = 0x400, scoped, tag = 'output window, operand 2, single buffered']
    %16 = vsyncpa [#allocation6], 0
    %17 = vsyncpa [#allocation7], 0
    %18 = vsyncpa [#allocation10], 0
    // Predicated region
    $region2: #{tpu_custom_call.1} parent=1 // pred_check
      _
    $region3: #{tpu_custom_call.1} parent=1 // pred_check_branch
      %20 = sbr.rel (0) target = $region5
    $region4: #{tpu_custom_call.1} parent=1 // pred_region
      _
    $region5: #{tpu_custom_call.1} parent=1 // pred_fallthru
      _
    // Predicated region
    $region6: #{tpu_custom_call.1} parent=1 // pred_check
      _
    $region7: #{tpu_custom_call.1} parent=1 // pred_check_branch
      %22 = sbr.rel (0) target = $region9
    $region8: #{tpu_custom_call.1} parent=1 // pred_region
      %24 = vsyncadd [#allocation6], 0
      %s25 = sshll.u32 %s1, 4
      %s26 = int_to_ptr.hbm [resolvable:$true] %s25
      %s27 = sshll.u32 [#allocation5], 4
      %s28 = int_to_ptr.vmem [resolvable:$true] %s27
      %33 = dma.hbm_to_vmem [thread:$0]  %s26, 256, %s28, [#allocation6], 128, 128, 8
    $region9: #{tpu_custom_call.1} parent=1 // pred_fallthru
      _
    // Predicated region
    $region10: #{tpu_custom_call.1} parent=1 // pred_check
      _
    $region11: #{tpu_custom_call.1} parent=1 // pred_check_branch
      %35 = sbr.rel (0) target = $region13
    $region12: #{tpu_custom_call.1} parent=1 // pred_region
      _
    $region13: #{tpu_custom_call.1} parent=1 // pred_fallthru
      _
    // Predicated region
    $region14: #{tpu_custom_call.1} parent=1 // pred_check
      _
    $region15: #{tpu_custom_call.1} parent=1 // pred_check_branch
      %37 = sbr.rel (0) target = $region17
    $region16: #{tpu_custom_call.1} parent=1 // pred_region
      _
    $region17: #{tpu_custom_call.1} parent=1 // pred_fallthru
      _
    // Predicated region
    $region18: #{tpu_custom_call.1} parent=1 // pred_check
      _
    $region19: #{tpu_custom_call.1} parent=1 // pred_check_branch
      %39 = sbr.rel (0) target = $region21
    $region20: #{tpu_custom_call.1} parent=1 // pred_region
      _
    $region21: #{tpu_custom_call.1} parent=1 // pred_fallthru
      _
    // Predicated region
    $region22: #{tpu_custom_call.1} parent=1 // pred_check
      _
    $region23: #{tpu_custom_call.1} parent=1 // pred_check_branch
      %41 = sbr.rel (0) target = $region25
    $region24: #{tpu_custom_call.1} parent=1 // pred_region
      _
    $region25: #{tpu_custom_call.1} parent=1 // pred_fallthru
      _
    // Predicated region
    $region26: #{tpu_custom_call.1} parent=1 // pred_check
      _
    $region27: #{tpu_custom_call.1} parent=1 // pred_check_branch
      %43 = sbr.rel (0) target = $region29
    $region28: #{tpu_custom_call.1} parent=1 // pred_region
      _
    $region29: #{tpu_custom_call.1} parent=1 // pred_fallthru
      _
    // Predicated region
    $region30: #{tpu_custom_call.1} parent=1 // pred_check
      _
    $region31: #{tpu_custom_call.1} parent=1 // pred_check_branch
      %45 = sbr.rel (0) target = $region33
    $region32: #{tpu_custom_call.1} parent=1 // pred_region
      _
    $region33: #{tpu_custom_call.1} parent=1 // pred_fallthru
      _
    // Predicated region
    $region34: #{tpu_custom_call.1} parent=1 // pred_check
      _
    $region35: #{tpu_custom_call.1} parent=1 // pred_check_branch
      %47 = sbr.rel (0) target = $region37
    $region36: #{tpu_custom_call.1} parent=1 // pred_region
      %49 = dma.done [#allocation6], 256
    $region37: #{tpu_custom_call.1} parent=1 // pred_fallthru
      _
    %v50 = vld [vmem:[%s0] sm:$0xff]
    %v51 = vld [vmem:[#allocation5] sm:$0xff]
    %v52 = vld [vmem:[#allocation5 + $0x8] sm:$0xff]
    %v53 = vld [vmem:[%s3] sm:$0x1]
    %v55 = vperm.slane %v53, 0
    %vm57 = vcmask 130048
    %v59 = vsel %vm57, %v50, 0
    %61 = vmatpush.msra.mxu0 0.0
    %62 = vmatpush.msra.mxu0 0.0
    %63 = vmatpush.msra.mxu0 0.0
    %64 = vmatpush.msra.mxu0 0.0
    %65 = vmatpush.msra.mxu0 0.0
    %66 = vmatpush.msra.mxu0 0.0
    %67 = vmatpush.msra.mxu0 0.0
    %68 = vmatpush.msra.mxu0 0.0
    %69 = vmatpush.msra.mxu0 0.0
    %70 = vmatpush.msra.mxu0 0.0
    %71 = vmatpush.msra.mxu0 0.0
    %72 = vmatpush.msra.mxu0 0.0
    %73 = vmatpush.msra.mxu0 0.0
    %74 = vmatpush.msra.mxu0 0.0
    %75 = vmatpush.msra.mxu0 %v52
    %76 = vmatpush.msra.mxu0 %v51
    %77 = vmatmul.f32.gmra.mxu0 %v59
    %v78 = vpop.f32.mrf.mxu0
    %v79 = vadd.f32 %v55, %v78
    %80 = vdwg.mxu0
    %81 = vst [vmem:[#allocation2] sm:$0xff] %v79
    %v82 = vld [vmem:[%s4] sm:$0x1]
    %vm83 = vcmask 253952
    %84 = vst.msk [vmem:[#allocation3] sm:$0x1] %vm83, %v82
    %v85 = vld [vmem:[%s5] sm:$0x1]
    %86 = vst.msk [vmem:[#allocation4] sm:$0x1] %vm83, %v85
    %v87 = vld [vmem:[#allocation3] sm:$0x1]
    %v88 = vld [vmem:[%s2] sm:$0xff]
    %v89 = vld [vmem:[%s2 + $0x8] sm:$0xff]
    %v90 = vld [vmem:[%s2 + $0x10] sm:$0xff]
    %v91 = vld [vmem:[%s2 + $0x18] sm:$0xff]
    %v92 = vld [vmem:[#allocation2] sm:$0x1]
    %vm93 = vcmask 261120
    %v95 = vsel %vm93, %v87, 0
    %97 = vmatpush.msra.mxu0 0.0
    %98 = vmatpush.msra.mxu0 0.0
    %99 = vmatpush.msra.mxu0 0.0
    %100 = vmatpush.msra.mxu0 0.0
    %101 = vmatpush.msra.mxu0 0.0
    %102 = vmatpush.msra.mxu0 0.0
    %103 = vmatpush.msra.mxu0 0.0
    %104 = vmatpush.msra.mxu0 0.0
    %105 = vmatpush.msra.mxu0 0.0
    %106 = vmatpush.msra.mxu0 0.0
    %107 = vmatpush.msra.mxu0 0.0
    %108 = vmatpush.msra.mxu0 0.0
    %109 = vmatpush.msra.mxu0 %v91
    %110 = vmatpush.msra.mxu0 %v90
    %111 = vmatpush.msra.mxu0 %v89
    %112 = vmatpush.msra.mxu0 %v88
    %113 = vmatmul.f32.gmra.mxu0 %v95
    %v114 = vpop.f32.mrf.mxu0
    %v115 = vadd.f32 %v92, %v114
    %116 = vdwg.mxu0
    %v117 = vxor.u32 %v115, 2147483648
    %v118 = vmul.f32 %v117, 1.442695
    %v119 = vpow.pop %v118
    %v120 = vadd.f32 %v119, 1.0
    %v121 = vrcp.pop %v120
    %v122 = vmul.f32 %v120, %v121
    %v123 = vsub.f32 1.0, %v122
    %v124 = vmul.f32 %v121, %v123
    %v125 = vadd.f32 %v121, %v124
    %vm126 = vweird.f32 %v120
    %vm127 = vweird.f32 %v121
    %vm128 = vmor %vm126, %vm127
    %v129 = vsel %vm128, %v121, %v125
    %v130 = vand.u32 2147483647, %v120
    %vm131 = vcmp.eq.f32.partialorder %v130, 8.507059e+37
    %v132 = vand.u32 %v120, 2147483648
    %v133 = vor.u32 1.1754944e-38, %v132
    %v134 = vsel %vm131, %v133, %v129
    %v135 = vmul.f32 1.0, %v134
    %v136 = vtanh.pop %v115
    %v137 = vld [vmem:[#allocation4] sm:$0x1]
    %v139 = vperm.slane %v137, 0
    %140 = vrot.lane.b32.xlu0 %v139, 32
    %v141 = vpop.permute.xlu0 %140
    %v143 = vmul.f32 %v135, %v141
    %145 = vrot.lane.b32.xlu0 %v136, 64
    %v146 = vpop.permute.xlu0 %145
    %v148 = vmul.f32 %v135, %v146
    %150 = vrot.lane.b32.xlu0 %v148, 32
    %v151 = vpop.permute.xlu0 %150
    %v153 = vadd.f32 %v143, %v151
    %v154 = vtanh.pop %v153
    %156 = vrot.lane.b32.xlu0 %v154, 64
    %v157 = vpop.permute.xlu0 %156
    %v159 = vmul.f32 %v135, %v157
    %161 = vrot.lane.b32.xlu0 %v153, 96
    %v162 = vpop.permute.xlu0 %161
    %164 = vst.msk [vmem:[#allocation4] sm:$0x1] %vm83, %v162
    %166 = vrot.lane.b32.xlu0 %v159, 32
    %v167 = vpop.permute.xlu0 %166
    %169 = vst.msk [vmem:[#allocation3] sm:$0x1] %vm83, %v167
    %v170 = vld [vmem:[#allocation3] sm:$0x1]
    %v171 = vld [vmem:[%s2] sm:$0xff]
    %v172 = vld [vmem:[%s2 + $0x8] sm:$0xff]
    %v173 = vld [vmem:[%s2 + $0x10] sm:$0xff]
    %v174 = vld [vmem:[%s2 + $0x18] sm:$0xff]
    %v175 = vld [vmem:[#allocation2 + $0x1] sm:$0x1]
    %v177 = vsel %vm93, %v170, 0
    %179 = vmatpush.msra.mxu0 0.0
    %180 = vmatpush.msra.mxu0 0.0
    %181 = vmatpush.msra.mxu0 0.0
    %182 = vmatpush.msra.mxu0 0.0
    %183 = vmatpush.msra.mxu0 0.0
    %184 = vmatpush.msra.mxu0 0.0
    %185 = vmatpush.msra.mxu0 0.0
    %186 = vmatpush.msra.mxu0 0.0
    %187 = vmatpush.msra.mxu0 0.0
    %188 = vmatpush.msra.mxu0 0.0
    %189 = vmatpush.msra.mxu0 0.0
    %190 = vmatpush.msra.mxu0 0.0
    %191 = vmatpush.msra.mxu0 %v174
    %192 = vmatpush.msra.mxu0 %v173
    %193 = vmatpush.msra.mxu0 %v172
    %194 = vmatpush.msra.mxu0 %v171
    %195 = vmatmul.f32.gmra.mxu0 %v177
    %v196 = vpop.f32.mrf.mxu0
    %v197 = vadd.f32 %v175, %v196
    %198 = vdwg.mxu0
    %v199 = vxor.u32 %v197, 2147483648
    %v200 = vmul.f32 %v199, 1.442695
    %v201 = vpow.pop %v200
    %v202 = vadd.f32 %v201, 1.0
    %v203 = vrcp.pop %v202
    %v204 = vmul.f32 %v202, %v203
    %v205 = vsub.f32 1.0, %v204
    %v206 = vmul.f32 %v203, %v205
    %v207 = vadd.f32 %v203, %v206
    %vm208 = vweird.f32 %v202
    %vm209 = vweird.f32 %v203
    %vm210 = vmor %vm208, %vm209
    %v211 = vsel %vm210, %v203, %v207
    %v212 = vand.u32 2147483647, %v202
    %vm213 = vcmp.eq.f32.partialorder %v212, 8.507059e+37
    %v214 = vand.u32 %v202, 2147483648
    %v215 = vor.u32 1.1754944e-38, %v214
    %v216 = vsel %vm213, %v215, %v211
    %v217 = vmul.f32 1.0, %v216
    %v218 = vtanh.pop %v197
    %v219 = vld [vmem:[#allocation4] sm:$0x1]
    %v221 = vperm.slane %v219, 0
    %222 = vrot.lane.b32.xlu0 %v221, 32
    %v223 = vpop.permute.xlu0 %222
    %v225 = vmul.f32 %v217, %v223
    %227 = vrot.lane.b32.xlu0 %v218, 64
    %v228 = vpop.permute.xlu0 %227
    %v230 = vmul.f32 %v217, %v228
    %232 = vrot.lane.b32.xlu0 %v230, 32
    %v233 = vpop.permute.xlu0 %232
    %v235 = vadd.f32 %v225, %v233
    %v236 = vtanh.pop %v235
    %238 = vrot.lane.b32.xlu0 %v236, 64
    %v239 = vpop.permute.xlu0 %238
    %v241 = vmul.f32 %v217, %v239
    %243 = vrot.lane.b32.xlu0 %v235, 96
    %v244 = vpop.permute.xlu0 %243
    %246 = vst.msk [vmem:[#allocation4] sm:$0x1] %vm83, %v244
    %248 = vrot.lane.b32.xlu0 %v241, 32
    %v249 = vpop.permute.xlu0 %248
    %251 = vst.msk [vmem:[#allocation3] sm:$0x1] %vm83, %v249
    %v252 = vld [vmem:[#allocation3] sm:$0x1]
    %v253 = vld [vmem:[%s2] sm:$0xff]
    %v254 = vld [vmem:[%s2 + $0x8] sm:$0xff]
    %v255 = vld [vmem:[%s2 + $0x10] sm:$0xff]
    %v256 = vld [vmem:[%s2 + $0x18] sm:$0xff]
    %v257 = vld [vmem:[#allocation2 + $0x2] sm:$0x1]
    %v259 = vsel %vm93, %v252, 0
    %261 = vmatpush.msra.mxu0 0.0
    %262 = vmatpush.msra.mxu0 0.0
    %263 = vmatpush.msra.mxu0 0.0
    %264 = vmatpush.msra.mxu0 0.0
    %265 = vmatpush.msra.mxu0 0.0
    %266 = vmatpush.msra.mxu0 0.0
    %267 = vmatpush.msra.mxu0 0.0
    %268 = vmatpush.msra.mxu0 0.0
    %269 = vmatpush.msra.mxu0 0.0
    %270 = vmatpush.msra.mxu0 0.0
    %271 = vmatpush.msra.mxu0 0.0
    %272 = vmatpush.msra.mxu0 0.0
    %273 = vmatpush.msra.mxu0 %v256
    %274 = vmatpush.msra.mxu0 %v255
    %275 = vmatpush.msra.mxu0 %v254
    %276 = vmatpush.msra.mxu0 %v253
    %277 = vmatmul.f32.gmra.mxu0 %v259
    %v278 = vpop.f32.mrf.mxu0
    %v279 = vadd.f32 %v257, %v278
    %280 = vdwg.mxu0
    %v281 = vxor.u32 %v279, 2147483648
    %v282 = vmul.f32 %v281, 1.442695
    %v283 = vpow.pop %v282
    %v284 = vadd.f32 %v283, 1.0
    %v285 = vrcp.pop %v284
    %v286 = vmul.f32 %v284, %v285
    %v287 = vsub.f32 1.0, %v286
    %v288 = vmul.f32 %v285, %v287
    %v289 = vadd.f32 %v285, %v288
    %vm290 = vweird.f32 %v284
    %vm291 = vweird.f32 %v285
    %vm292 = vmor %vm290, %vm291
    %v293 = vsel %vm292, %v285, %v289
    %v294 = vand.u32 2147483647, %v284
    %vm295 = vcmp.eq.f32.partialorder %v294, 8.507059e+37
    %v296 = vand.u32 %v284, 2147483648
    %v297 = vor.u32 1.1754944e-38, %v296
    %v298 = vsel %vm295, %v297, %v293
    %v299 = vmul.f32 1.0, %v298
    %v300 = vtanh.pop %v279
    %v301 = vld [vmem:[#allocation4] sm:$0x1]
    %v303 = vperm.slane %v301, 0
    %304 = vrot.lane.b32.xlu0 %v303, 32
    %v305 = vpop.permute.xlu0 %304
    %v307 = vmul.f32 %v299, %v305
    %309 = vrot.lane.b32.xlu0 %v300, 64
    %v310 = vpop.permute.xlu0 %309
    %v312 = vmul.f32 %v299, %v310
    %314 = vrot.lane.b32.xlu0 %v312, 32
    %v315 = vpop.permute.xlu0 %314
    %v317 = vadd.f32 %v307, %v315
    %v318 = vtanh.pop %v317
    %320 = vrot.lane.b32.xlu0 %v318, 64
    %v321 = vpop.permute.xlu0 %320
    %v323 = vmul.f32 %v299, %v321
    %325 = vrot.lane.b32.xlu0 %v317, 96
    %v326 = vpop.permute.xlu0 %325
    %328 = vst.msk [vmem:[#allocation4] sm:$0x1] %vm83, %v326
    %330 = vrot.lane.b32.xlu0 %v323, 32
    %v331 = vpop.permute.xlu0 %330
    %333 = vst.msk [vmem:[#allocation3] sm:$0x1] %vm83, %v331
    %v334 = vld [vmem:[#allocation3] sm:$0x1]
    %v335 = vld [vmem:[%s2] sm:$0xff]
    %v336 = vld [vmem:[%s2 + $0x8] sm:$0xff]
    %v337 = vld [vmem:[%s2 + $0x10] sm:$0xff]
    %v338 = vld [vmem:[%s2 + $0x18] sm:$0xff]
    %v339 = vld [vmem:[#allocation2 + $0x3] sm:$0x1]
    %v341 = vsel %vm93, %v334, 0
    %343 = vmatpush.msra.mxu0 0.0
    %344 = vmatpush.msra.mxu0 0.0
    %345 = vmatpush.msra.mxu0 0.0
    %346 = vmatpush.msra.mxu0 0.0
    %347 = vmatpush.msra.mxu0 0.0
    %348 = vmatpush.msra.mxu0 0.0
    %349 = vmatpush.msra.mxu0 0.0
    %350 = vmatpush.msra.mxu0 0.0
    %351 = vmatpush.msra.mxu0 0.0
    %352 = vmatpush.msra.mxu0 0.0
    %353 = vmatpush.msra.mxu0 0.0
    %354 = vmatpush.msra.mxu0 0.0
    %355 = vmatpush.msra.mxu0 %v338
    %356 = vmatpush.msra.mxu0 %v337
    %357 = vmatpush.msra.mxu0 %v336
    %358 = vmatpush.msra.mxu0 %v335
    %359 = vmatmul.f32.gmra.mxu0 %v341
    %v360 = vpop.f32.mrf.mxu0
    %v361 = vadd.f32 %v339, %v360
    %362 = vdwg.mxu0
    %v363 = vxor.u32 %v361, 2147483648
    %v364 = vmul.f32 %v363, 1.442695
    %v365 = vpow.pop %v364
    %v366 = vadd.f32 %v365, 1.0
    %v367 = vrcp.pop %v366
    %v368 = vmul.f32 %v366, %v367
    %v369 = vsub.f32 1.0, %v368
    %v370 = vmul.f32 %v367, %v369
    %v371 = vadd.f32 %v367, %v370
    %vm372 = vweird.f32 %v366
    %vm373 = vweird.f32 %v367
    %vm374 = vmor %vm372, %vm373
    %v375 = vsel %vm374, %v367, %v371
    %v376 = vand.u32 2147483647, %v366
    %vm377 = vcmp.eq.f32.partialorder %v376, 8.507059e+37
    %v378 = vand.u32 %v366, 2147483648
    %v379 = vor.u32 1.1754944e-38, %v378
    %v380 = vsel %vm377, %v379, %v375
    %v381 = vmul.f32 1.0, %v380
    %v382 = vtanh.pop %v361
    %v383 = vld [vmem:[#allocation4] sm:$0x1]
    %v385 = vperm.slane %v383, 0
    %386 = vrot.lane.b32.xlu0 %v385, 32
    %v387 = vpop.permute.xlu0 %386
    %v389 = vmul.f32 %v381, %v387
    %391 = vrot.lane.b32.xlu0 %v382, 64
    %v392 = vpop.permute.xlu0 %391
    %v394 = vmul.f32 %v381, %v392
    %396 = vrot.lane.b32.xlu0 %v394, 32
    %v397 = vpop.permute.xlu0 %396
    %v399 = vadd.f32 %v389, %v397
    %v400 = vtanh.pop %v399
    %402 = vrot.lane.b32.xlu0 %v400, 64
    %v403 = vpop.permute.xlu0 %402
    %v405 = vmul.f32 %v381, %v403
    %407 = vrot.lane.b32.xlu0 %v399, 96
    %v408 = vpop.permute.xlu0 %407
    %410 = vst.msk [vmem:[#allocation4] sm:$0x1] %vm83, %v408
    %412 = vrot.lane.b32.xlu0 %v405, 32
    %v413 = vpop.permute.xlu0 %412
    %415 = vst.msk [vmem:[#allocation3] sm:$0x1] %vm83, %v413
    %v416 = vld [vmem:[#allocation3] sm:$0x1]
    %v417 = vld [vmem:[%s2] sm:$0xff]
    %v418 = vld [vmem:[%s2 + $0x8] sm:$0xff]
    %v419 = vld [vmem:[%s2 + $0x10] sm:$0xff]
    %v420 = vld [vmem:[%s2 + $0x18] sm:$0xff]
    %v421 = vld [vmem:[#allocation2 + $0x4] sm:$0x1]
    %v423 = vsel %vm93, %v416, 0
    %425 = vmatpush.msra.mxu0 0.0
    %426 = vmatpush.msra.mxu0 0.0
    %427 = vmatpush.msra.mxu0 0.0
    %428 = vmatpush.msra.mxu0 0.0
    %429 = vmatpush.msra.mxu0 0.0
    %430 = vmatpush.msra.mxu0 0.0
    %431 = vmatpush.msra.mxu0 0.0
    %432 = vmatpush.msra.mxu0 0.0
    %433 = vmatpush.msra.mxu0 0.0
    %434 = vmatpush.msra.mxu0 0.0
    %435 = vmatpush.msra.mxu0 0.0
    %436 = vmatpush.msra.mxu0 0.0
    %437 = vmatpush.msra.mxu0 %v420
    %438 = vmatpush.msra.mxu0 %v419
    %439 = vmatpush.msra.mxu0 %v418
    %440 = vmatpush.msra.mxu0 %v417
    %441 = vmatmul.f32.gmra.mxu0 %v423
    %v442 = vpop.f32.mrf.mxu0
    %v443 = vadd.f32 %v421, %v442
    %444 = vdwg.mxu0
    %v445 = vxor.u32 %v443, 2147483648
    %v446 = vmul.f32 %v445, 1.442695
    %v447 = vpow.pop %v446
    %v448 = vadd.f32 %v447, 1.0
    %v449 = vrcp.pop %v448
    %v450 = vmul.f32 %v448, %v449
    %v451 = vsub.f32 1.0, %v450
    %v452 = vmul.f32 %v449, %v451
    %v453 = vadd.f32 %v449, %v452
    %vm454 = vweird.f32 %v448
    %vm455 = vweird.f32 %v449
    %vm456 = vmor %vm454, %vm455
    %v457 = vsel %vm456, %v449, %v453
    %v458 = vand.u32 2147483647, %v448
    %vm459 = vcmp.eq.f32.partialorder %v458, 8.507059e+37
    %v460 = vand.u32 %v448, 2147483648
    %v461 = vor.u32 1.1754944e-38, %v460
    %v462 = vsel %vm459, %v461, %v457
    %v463 = vmul.f32 1.0, %v462
    %v464 = vtanh.pop %v443
    %v465 = vld [vmem:[#allocation4] sm:$0x1]
    %v467 = vperm.slane %v465, 0
    %468 = vrot.lane.b32.xlu0 %v467, 32
    %v469 = vpop.permute.xlu0 %468
    %v471 = vmul.f32 %v463, %v469
    %473 = vrot.lane.b32.xlu0 %v464, 64
    %v474 = vpop.permute.xlu0 %473
    %v476 = vmul.f32 %v463, %v474
    %478 = vrot.lane.b32.xlu0 %v476, 32
    %v479 = vpop.permute.xlu0 %478
    %v481 = vadd.f32 %v471, %v479
    %v482 = vtanh.pop %v481
    %484 = vrot.lane.b32.xlu0 %v482, 64
    %v485 = vpop.permute.xlu0 %484
    %v487 = vmul.f32 %v463, %v485
    %489 = vrot.lane.b32.xlu0 %v481, 96
    %v490 = vpop.permute.xlu0 %489
    %492 = vst.msk [vmem:[#allocation4] sm:$0x1] %vm83, %v490
    %494 = vrot.lane.b32.xlu0 %v487, 32
    %v495 = vpop.permute.xlu0 %494
    %497 = vst.msk [vmem:[#allocation3] sm:$0x1] %vm83, %v495
    %v498 = vld [vmem:[#allocation3] sm:$0x1]
    %v499 = vld [vmem:[%s2] sm:$0xff]
    %v500 = vld [vmem:[%s2 + $0x8] sm:$0xff]
    %v501 = vld [vmem:[%s2 + $0x10] sm:$0xff]
    %v502 = vld [vmem:[%s2 + $0x18] sm:$0xff]
    %v503 = vld [vmem:[#allocation2 + $0x5] sm:$0x1]
    %v505 = vsel %vm93, %v498, 0
    %507 = vmatpush.msra.mxu0 0.0
    %508 = vmatpush.msra.mxu0 0.0
    %509 = vmatpush.msra.mxu0 0.0
    %510 = vmatpush.msra.mxu0 0.0
    %511 = vmatpush.msra.mxu0 0.0
    %512 = vmatpush.msra.mxu0 0.0
    %513 = vmatpush.msra.mxu0 0.0
    %514 = vmatpush.msra.mxu0 0.0
    %515 = vmatpush.msra.mxu0 0.0
    %516 = vmatpush.msra.mxu0 0.0
    %517 = vmatpush.msra.mxu0 0.0
    %518 = vmatpush.msra.mxu0 0.0
    %519 = vmatpush.msra.mxu0 %v502
    %520 = vmatpush.msra.mxu0 %v501
    %521 = vmatpush.msra.mxu0 %v500
    %522 = vmatpush.msra.mxu0 %v499
    %523 = vmatmul.f32.gmra.mxu0 %v505
    %v524 = vpop.f32.mrf.mxu0
    %v525 = vadd.f32 %v503, %v524
    %526 = vdwg.mxu0
    %v527 = vxor.u32 %v525, 2147483648
    %v528 = vmul.f32 %v527, 1.442695
    %v529 = vpow.pop %v528
    %v530 = vadd.f32 %v529, 1.0
    %v531 = vrcp.pop %v530
    %v532 = vmul.f32 %v530, %v531
    %v533 = vsub.f32 1.0, %v532
    %v534 = vmul.f32 %v531, %v533
    %v535 = vadd.f32 %v531, %v534
    %vm536 = vweird.f32 %v530
    %vm537 = vweird.f32 %v531
    %vm538 = vmor %vm536, %vm537
    %v539 = vsel %vm538, %v531, %v535
    %v540 = vand.u32 2147483647, %v530
    %vm541 = vcmp.eq.f32.partialorder %v540, 8.507059e+37
    %v542 = vand.u32 %v530, 2147483648
    %v543 = vor.u32 1.1754944e-38, %v542
    %v544 = vsel %vm541, %v543, %v539
    %v545 = vmul.f32 1.0, %v544
    %v546 = vtanh.pop %v525
    %v547 = vld [vmem:[#allocation4] sm:$0x1]
    %v549 = vperm.slane %v547, 0
    %550 = vrot.lane.b32.xlu0 %v549, 32
    %v551 = vpop.permute.xlu0 %550
    %v553 = vmul.f32 %v545, %v551
    %555 = vrot.lane.b32.xlu0 %v546, 64
    %v556 = vpop.permute.xlu0 %555
    %v558 = vmul.f32 %v545, %v556
    %560 = vrot.lane.b32.xlu0 %v558, 32
    %v561 = vpop.permute.xlu0 %560
    %v563 = vadd.f32 %v553, %v561
    %v564 = vtanh.pop %v563
    %566 = vrot.lane.b32.xlu0 %v564, 64
    %v567 = vpop.permute.xlu0 %566
    %v569 = vmul.f32 %v545, %v567
    %571 = vrot.lane.b32.xlu0 %v563, 96
    %v572 = vpop.permute.xlu0 %571
    %574 = vst.msk [vmem:[#allocation4] sm:$0x1] %vm83, %v572
    %576 = vrot.lane.b32.xlu0 %v569, 32
    %v577 = vpop.permute.xlu0 %576
    %579 = vst.msk [vmem:[#allocation3] sm:$0x1] %vm83, %v577
    %v580 = vld [vmem:[#allocation3] sm:$0x1]
    %v581 = vld [vmem:[%s2] sm:$0xff]
    %v582 = vld [vmem:[%s2 + $0x8] sm:$0xff]
    %v583 = vld [vmem:[%s2 + $0x10] sm:$0xff]
    %v584 = vld [vmem:[%s2 + $0x18] sm:$0xff]
    %v585 = vld [vmem:[#allocation2 + $0x6] sm:$0x1]
    %v587 = vsel %vm93, %v580, 0
    %589 = vmatpush.msra.mxu0 0.0
    %590 = vmatpush.msra.mxu0 0.0
    %591 = vmatpush.msra.mxu0 0.0
    %592 = vmatpush.msra.mxu0 0.0
    %593 = vmatpush.msra.mxu0 0.0
    %594 = vmatpush.msra.mxu0 0.0
    %595 = vmatpush.msra.mxu0 0.0
    %596 = vmatpush.msra.mxu0 0.0
    %597 = vmatpush.msra.mxu0 0.0
    %598 = vmatpush.msra.mxu0 0.0
    %599 = vmatpush.msra.mxu0 0.0
    %600 = vmatpush.msra.mxu0 0.0
    %601 = vmatpush.msra.mxu0 %v584
    %602 = vmatpush.msra.mxu0 %v583
    %603 = vmatpush.msra.mxu0 %v582
    %604 = vmatpush.msra.mxu0 %v581
    %605 = vmatmul.f32.gmra.mxu0 %v587
    %v606 = vpop.f32.mrf.mxu0
    %v607 = vadd.f32 %v585, %v606
    %608 = vdwg.mxu0
    %v609 = vxor.u32 %v607, 2147483648
    %v610 = vmul.f32 %v609, 1.442695
    %v611 = vpow.pop %v610
    %v612 = vadd.f32 %v611, 1.0
    %v613 = vrcp.pop %v612
    %v614 = vmul.f32 %v612, %v613
    %v615 = vsub.f32 1.0, %v614
    %v616 = vmul.f32 %v613, %v615
    %v617 = vadd.f32 %v613, %v616
    %vm618 = vweird.f32 %v612
    %vm619 = vweird.f32 %v613
    %vm620 = vmor %vm618, %vm619
    %v621 = vsel %vm620, %v613, %v617
    %v622 = vand.u32 2147483647, %v612
    %vm623 = vcmp.eq.f32.partialorder %v622, 8.507059e+37
    %v624 = vand.u32 %v612, 2147483648
    %v625 = vor.u32 1.1754944e-38, %v624
    %v626 = vsel %vm623, %v625, %v621
    %v627 = vmul.f32 1.0, %v626
    %v628 = vtanh.pop %v607
    %v629 = vld [vmem:[#allocation4] sm:$0x1]
    %v631 = vperm.slane %v629, 0
    %632 = vrot.lane.b32.xlu0 %v631, 32
    %v633 = vpop.permute.xlu0 %632
    %v635 = vmul.f32 %v627, %v633
    %637 = vrot.lane.b32.xlu0 %v628, 64
    %v638 = vpop.permute.xlu0 %637
    %v640 = vmul.f32 %v627, %v638
    %642 = vrot.lane.b32.xlu0 %v640, 32
    %v643 = vpop.permute.xlu0 %642
    %v645 = vadd.f32 %v635, %v643
    %v646 = vtanh.pop %v645
    %648 = vrot.lane.b32.xlu0 %v646, 64
    %v649 = vpop.permute.xlu0 %648
    %v651 = vmul.f32 %v627, %v649
    %653 = vrot.lane.b32.xlu0 %v645, 96
    %v654 = vpop.permute.xlu0 %653
    %656 = vst.msk [vmem:[#allocation4] sm:$0x1] %vm83, %v654
    %658 = vrot.lane.b32.xlu0 %v651, 32
    %v659 = vpop.permute.xlu0 %658
    %661 = vst.msk [vmem:[#allocation3] sm:$0x1] %vm83, %v659
    %v662 = vld [vmem:[#allocation3] sm:$0x1]
    %v663 = vld [vmem:[%s2] sm:$0xff]
    %v664 = vld [vmem:[%s2 + $0x8] sm:$0xff]
    %v665 = vld [vmem:[%s2 + $0x10] sm:$0xff]
    %v666 = vld [vmem:[%s2 + $0x18] sm:$0xff]
    %v667 = vld [vmem:[#allocation2 + $0x7] sm:$0x1]
    %v669 = vsel %vm93, %v662, 0
    %671 = vmatpush.msra.mxu0 0.0
    %672 = vmatpush.msra.mxu0 0.0
    %673 = vmatpush.msra.mxu0 0.0
    %674 = vmatpush.msra.mxu0 0.0
    %675 = vmatpush.msra.mxu0 0.0
    %676 = vmatpush.msra.mxu0 0.0
    %677 = vmatpush.msra.mxu0 0.0
    %678 = vmatpush.msra.mxu0 0.0
    %679 = vmatpush.msra.mxu0 0.0
    %680 = vmatpush.msra.mxu0 0.0
    %681 = vmatpush.msra.mxu0 0.0
    %682 = vmatpush.msra.mxu0 0.0
    %683 = vmatpush.msra.mxu0 %v666
    %684 = vmatpush.msra.mxu0 %v665
    %685 = vmatpush.msra.mxu0 %v664
    %686 = vmatpush.msra.mxu0 %v663
    %687 = vmatmul.f32.gmra.mxu0 %v669
    %v688 = vpop.f32.mrf.mxu0
    %v689 = vadd.f32 %v667, %v688
    %690 = vdwg.mxu0
    %v691 = vxor.u32 %v689, 2147483648
    %v692 = vmul.f32 %v691, 1.442695
    %v693 = vpow.pop %v692
    %v694 = vadd.f32 %v693, 1.0
    %v695 = vrcp.pop %v694
    %v696 = vmul.f32 %v694, %v695
    %v697 = vsub.f32 1.0, %v696
    %v698 = vmul.f32 %v695, %v697
    %v699 = vadd.f32 %v695, %v698
    %vm700 = vweird.f32 %v694
    %vm701 = vweird.f32 %v695
    %vm702 = vmor %vm700, %vm701
    %v703 = vsel %vm702, %v695, %v699
    %v704 = vand.u32 2147483647, %v694
    %vm705 = vcmp.eq.f32.partialorder %v704, 8.507059e+37
    %v706 = vand.u32 %v694, 2147483648
    %v707 = vor.u32 1.1754944e-38, %v706
    %v708 = vsel %vm705, %v707, %v703
    %v709 = vmul.f32 1.0, %v708
    %v710 = vtanh.pop %v689
    %v711 = vld [vmem:[#allocation4] sm:$0x1]
    %v713 = vperm.slane %v711, 0
    %714 = vrot.lane.b32.xlu0 %v713, 32
    %v715 = vpop.permute.xlu0 %714
    %v717 = vmul.f32 %v709, %v715
    %719 = vrot.lane.b32.xlu0 %v710, 64
    %v720 = vpop.permute.xlu0 %719
    %v722 = vmul.f32 %v709, %v720
    %724 = vrot.lane.b32.xlu0 %v722, 32
    %v725 = vpop.permute.xlu0 %724
    %v727 = vadd.f32 %v717, %v725
    %v728 = vtanh.pop %v727
    %730 = vrot.lane.b32.xlu0 %v728, 64
    %v731 = vpop.permute.xlu0 %730
    %v733 = vmul.f32 %v709, %v731
    %735 = vrot.lane.b32.xlu0 %v727, 96
    %v736 = vpop.permute.xlu0 %735
    %738 = vst.msk [vmem:[#allocation4] sm:$0x1] %vm83, %v736
    %740 = vrot.lane.b32.xlu0 %v733, 32
    %v741 = vpop.permute.xlu0 %740
    %743 = vst.msk [vmem:[#allocation3] sm:$0x1] %vm83, %v741
    %v744 = vld [vmem:[#allocation3] sm:$0x1]
    %v745 = vld [vmem:[%s6] sm:$0xff]
    %v746 = vld [vmem:[%s6 + $0x8] sm:$0xff]
    %v747 = vld [vmem:[%s6 + $0x10] sm:$0xff]
    %v748 = vld [vmem:[%s6 + $0x18] sm:$0xff]
    %v749 = vld [vmem:[%s7] sm:$0x1]
    %v751 = vsel %vm93, %v744, 0
    %753 = vmatpush.msra.mxu0 0.0
    %754 = vmatpush.msra.mxu0 0.0
    %755 = vmatpush.msra.mxu0 0.0
    %756 = vmatpush.msra.mxu0 0.0
    %757 = vmatpush.msra.mxu0 0.0
    %758 = vmatpush.msra.mxu0 0.0
    %759 = vmatpush.msra.mxu0 0.0
    %760 = vmatpush.msra.mxu0 0.0
    %761 = vmatpush.msra.mxu0 0.0
    %762 = vmatpush.msra.mxu0 0.0
    %763 = vmatpush.msra.mxu0 0.0
    %764 = vmatpush.msra.mxu0 0.0
    %765 = vmatpush.msra.mxu0 %v748
    %766 = vmatpush.msra.mxu0 %v747
    %767 = vmatpush.msra.mxu0 %v746
    %768 = vmatpush.msra.mxu0 %v745
    %769 = vmatmul.f32.gmra.mxu0 %v751
    %v770 = vpop.f32.mrf.mxu0
    %v771 = vadd.f32 %v749, %v770
    %772 = vdwg.mxu0
    %vm773 = vcmask 57344
    %v774 = vsel %vm773, %v771, -inf
    %775 = vmax.xlane.f32.xlu0 %v774
    %v776 = vpop.xlane.xlu0 %775
    %v777 = vsub.f32 %v771, %v776
    %v778 = vmul.f32 %v777, 1.442695
    %v779 = vpow.pop %v778
    %v780 = vsel %vm773, %v779, 0.0
    %781 = vadd.xlane.f32.xlu0 %v780
    %v782 = vpop.xlane.xlu0 %781
    %v783 = vlog2.pop %v782
    %v784 = vmul.f32 %v783, 0.6931472
    %v785 = vsub.f32 %v777, %v784
    %786 = vst.msk [vmem:[#allocation8] sm:$0x1] %vm773, %v785
    %v787 = vld [vmem:[#allocation3] sm:$0x1]
    %788 = vst.msk [vmem:[#allocation9] sm:$0x1] %vm83, %v787
    %v789 = vld [vmem:[#allocation4] sm:$0x1]
    %790 = vst.msk [vmem:[#allocation11] sm:$0x1] %vm83, %v789
    // Predicated region
    $region38: #{tpu_custom_call.1} parent=1 // pred_check
      _
    $region39: #{tpu_custom_call.1} parent=1 // pred_check_branch
      %792 = sbr.rel (0) target = $region41
    $region40: #{tpu_custom_call.1} parent=1 // pred_region
      %794 = vsyncadd [#allocation7], 0
      %s796 = sshll.u32 [#allocation8], 4
      %s797 = int_to_ptr.vmem [resolvable:$true] %s796
      %s798 = sshll.u32 %s8, 4
      %s799 = int_to_ptr.hbm [resolvable:$true] %s798
      %801 = dma.vmem_to_hbm [thread:$0]  %s797, 16, %s799, [#allocation7]
    $region41: #{tpu_custom_call.1} parent=1 // pred_fallthru
      _
    // Predicated region
    $region42: #{tpu_custom_call.1} parent=1 // pred_check
      _
    $region43: #{tpu_custom_call.1} parent=1 // pred_check_branch
      %803 = sbr.rel (0) target = $region45
    $region44: #{tpu_custom_call.1} parent=1 // pred_region
      %805 = vsyncadd [#allocation10], 0
      %s807 = sshll.u32 [#allocation9], 4
      %s808 = int_to_ptr.vmem [resolvable:$true] %s807
      %s809 = sshll.u32 %s9, 4
      %s810 = int_to_ptr.hbm [resolvable:$true] %s809
      %812 = dma.vmem_to_hbm [thread:$0]  %s808, 16, %s810, [#allocation10]
    $region45: #{tpu_custom_call.1} parent=1 // pred_fallthru
      _
    // Predicated region
    $region46: #{tpu_custom_call.1} parent=1 // pred_check
      _
    $region47: #{tpu_custom_call.1} parent=1 // pred_check_branch
      %814 = sbr.rel (0) target = $region49
    $region48: #{tpu_custom_call.1} parent=1 // pred_region
      %816 = vsyncadd [#allocation10], 0
      %s818 = sshll.u32 [#allocation11], 4
      %s819 = int_to_ptr.vmem [resolvable:$true] %s818
      %s820 = sshll.u32 %s10, 4
      %s821 = int_to_ptr.hbm [resolvable:$true] %s820
      %823 = dma.vmem_to_hbm [thread:$0]  %s819, 16, %s821, [#allocation10]
    $region49: #{tpu_custom_call.1} parent=1 // pred_fallthru
      _
    // Predicated region
    $region50: #{tpu_custom_call.1} parent=1 // pred_check
      _
    $region51: #{tpu_custom_call.1} parent=1 // pred_check_branch
      %825 = sbr.rel (0) target = $region53
    $region52: #{tpu_custom_call.1} parent=1 // pred_region
      %827 = dma.done [#allocation7], 16
    $region53: #{tpu_custom_call.1} parent=1 // pred_fallthru
      _
    // Predicated region
    $region54: #{tpu_custom_call.1} parent=1 // pred_check
      _
    $region55: #{tpu_custom_call.1} parent=1 // pred_check_branch
      %829 = sbr.rel (0) target = $region57
    $region56: #{tpu_custom_call.1} parent=1 // pred_region
      %831 = dma.done [#allocation10], 16
    $region57: #{tpu_custom_call.1} parent=1 // pred_fallthru
      _
    // Predicated region
    $region58: #{tpu_custom_call.1} parent=1 // pred_check
      _
    $region59: #{tpu_custom_call.1} parent=1 // pred_check_branch
      %833 = sbr.rel (0) target = $region61
    $region60: #{tpu_custom_call.1} parent=1 // pred_region
      %835 = dma.done [#allocation10], 16
    $region61: #{tpu_custom_call.1} parent=1 // pred_fallthru
      _
    %836 = vsyncpa [#allocation6], 1
    %837 = vsyncpa [#allocation7], 1
    %838 = vsyncpa [#allocation10], 1

</llo_original>
